<compile_context>
chip_gen: v5e
topology: v5e:2x2
jax: 0.10.0
libtpu: 0.0.40
codegen_flags: <defaults>
</compile_context>

<pallas_src>
import functools

import jax
import jax.numpy as jnp
from jax.experimental import pallas as pl
from jax.experimental.pallas import tpu as pltpu

GAMMA = 1.5          # focal gamma (modulating exponent)
ALPHA = 0.25         # focal alpha
LANE = 128           # lane-dense last dim presented to the kernel
MAX_TILE_ROWS = 2048 # (2048, 128) f32 = 1 MiB per input block
NUM_CORES = 2        # leading "parallel" grid axis (2 TCs on v7x)


def _round_up(x, m):
    return (x + m - 1) // m * m


def _focal_loss_kernel(pred_ref, true_ref, out_ref, *,
                       tile_rows, blocks_per_core, n_valid):
    c = pl.program_id(0)   # core-parallel axis
    i = pl.program_id(1)   # reduction axis (arbitrary)

    @pl.when(i == 0)
    def _init():
        out_ref[...] = jnp.zeros_like(out_ref)

    x = pred_ref[...].astype(jnp.float32)
    y = true_ref[...].astype(jnp.float32)

    # Validity mask for padded tail elements (padding is not loss-neutral).
    blk = c * blocks_per_core + i
    row = jax.lax.broadcasted_iota(jnp.int32, (tile_rows, LANE), 0)
    lane = jax.lax.broadcasted_iota(jnp.int32, (tile_rows, LANE), 1)
    flat_idx = (blk * tile_rows + row) * LANE + lane
    valid = flat_idx < n_valid

    # Stable BCE-with-logits; e = exp(-|x|) is shared with the sigmoid below.
    e = jnp.exp(-jnp.abs(x))
    bce = jnp.maximum(x, 0.0) - x * y + jnp.log1p(e)

    # sigmoid(x) from the same e: p = 1/(1+e) if x>=0 else e/(1+e)
    r = pl.reciprocal(1.0 + e)
    p = jnp.where(x >= 0.0, r, e * r)

    # Focal modulation (algebraically simplified; exact for binary targets).
    p_t = (1.0 - p) + y * (2.0 * p - 1.0)
    alpha_factor = (1.0 - ALPHA) + y * (2.0 * ALPHA - 1.0)
    z = jnp.maximum(1.0 - p_t, 0.0)
    modulating = z * jnp.sqrt(z)          # z ** 1.5 without log/exp

    loss = jnp.where(valid, bce * alpha_factor * modulating, 0.0)

    # Vector accumulate: fold sublane chunks with plain VPU adds into the
    # (8, 128) output block; the cross-lane reduce happens once, outside.
    out_ref[...] += jnp.sum(loss.reshape(tile_rows // 8, 8, LANE), axis=0)


def focal_loss(pred, true):
    """Mean focal BCE-with-logits loss over all elements of pred/true."""
    assert pred.shape == true.shape
    n_total = int(pred.size)

    flat_pred = pred.reshape(-1)
    flat_true = true.reshape(-1)

    rows = -(-n_total // LANE)                          # cdiv
    tile_rows = min(MAX_TILE_ROWS, _round_up(rows, 8))  # multiple of 8
    total_blocks = -(-rows // tile_rows)
    blocks_per_core = -(-total_blocks // NUM_CORES)
    padded_rows = NUM_CORES * blocks_per_core * tile_rows
    n_padded = padded_rows * LANE

    if n_padded != n_total:
        pad = n_padded - n_total
        flat_pred = jnp.pad(flat_pred, (0, pad))
        flat_true = jnp.pad(flat_true, (0, pad))

    pred2d = flat_pred.reshape(padded_rows, LANE)
    true2d = flat_true.reshape(padded_rows, LANE)

    kernel = functools.partial(
        _focal_loss_kernel,
        tile_rows=tile_rows,
        blocks_per_core=blocks_per_core,
        n_valid=n_total,
    )

    in_block = pl.BlockSpec(
        (tile_rows, LANE),
        lambda c, i: (c * blocks_per_core + i, 0),
    )

    # One (8, 128) accumulator block per core.
    partials = pl.pallas_call(
        kernel,
        out_shape=jax.ShapeDtypeStruct((NUM_CORES * 8, LANE), jnp.float32),
        grid_spec=pltpu.PrefetchScalarGridSpec(
            num_scalar_prefetch=0,
            grid=(NUM_CORES, blocks_per_core),
            in_specs=[in_block, in_block],
            out_specs=pl.BlockSpec((8, LANE), lambda c, i: (c, 0)),
        ),
        compiler_params=pltpu.CompilerParams(
            dimension_semantics=("parallel", "arbitrary"),
            vmem_limit_bytes=32 * 1024 * 1024,
        ),
    )(pred2d, true2d)

    # reduction == 'mean' of the wrapped BCEWithLogitsLoss.
    return jnp.sum(partials) / n_total


def _focal_loss_ref(pred, true):
    x = pred.astype(jnp.float32)
    y = true.astype(jnp.float32)
    bce = jnp.maximum(x, 0.0) - x * y + jnp.log1p(jnp.exp(-jnp.abs(x)))
    p = jax.nn.sigmoid(x)
    p_t = y * p + (1.0 - y) * (1.0 - p)
    alpha_factor = y * ALPHA + (1.0 - y) * (1.0 - ALPHA)
    modulating_factor = (1.0 - p_t) ** GAMMA
    return jnp.mean(bce * alpha_factor * modulating_factor)


if __name__ == "__main__":
    key = jax.random.PRNGKey(0)
    k1, k2, k3, k4 = jax.random.split(key, 4)

    # NCHW-shaped logits as a detection head would produce: (2, 4, 16, 16)
    pred = jax.random.normal(k1, (2, 4, 16, 16), dtype=jnp.float32) * 3.0
    true = (jax.random.uniform(k2, (2, 4, 16, 16)) > 0.7).astype(jnp.float32)

    loss = focal_loss(pred, true)
    jax.block_until_ready(loss)
    ref = _focal_loss_ref(pred, true)
    assert jnp.allclose(loss, ref, rtol=1e-5, atol=1e-6), (loss, ref)

    # Ragged size (not a multiple of 128) to exercise the in-kernel tail mask.
    pred2 = jax.random.normal(k3, (3, 5, 7, 9), dtype=jnp.float32) * 2.0
    true2 = (jax.random.uniform(k4, (3, 5, 7, 9)) > 0.5).astype(jnp.float32)
    loss2 = focal_loss(pred2, true2)
    jax.block_until_ready(loss2)
    ref2 = _focal_loss_ref(pred2, true2)
    assert jnp.allclose(loss2, ref2, rtol=1e-5, atol=1e-6), (loss2, ref2)

    print("KERNEL_OK")
</pallas_src>

<mosaic_0001>
module attributes {stable_mosaic.version = 11 : i64} {
  func.func @_focal_loss_kernel(%arg0: i32, %arg1: i32, %arg2: memref<16x128xf32, #tpu.memory_space<vmem>>, %arg3: memref<16x128xf32, #tpu.memory_space<vmem>>, %arg4: memref<8x128xf32, #tpu.memory_space<vmem>>) attributes {dimension_semantics = [#tpu.dimension_semantics<parallel>, #tpu.dimension_semantics<arbitrary>], iteration_bounds = array<i64: 2, 1>, scalar_prefetch = 0 : i64, scratch_operands = 0 : i64, tpu.core_type = #tpu.core_type<tc>, window_params = [{transform_indices = @transform_0, window_bounds = array<i64: 16, 128>}, {transform_indices = @transform_1, window_bounds = array<i64: 16, 128>}, {transform_indices = @transform_2, window_bounds = array<i64: 8, 128>}]} {
    %c0_i32 = arith.constant 0 : i32
    %0 = arith.cmpi eq, %arg1, %c0_i32 : i32
    %1 = arith.extui %0 : i1 to i32
    %c0_i32_0 = arith.constant 0 : i32
    %2 = arith.cmpi ne, %1, %c0_i32_0 : i32
    scf.if %2 {
      %cst_20 = arith.constant 0.000000e+00 : f32
      %61 = vector.broadcast %cst_20 : f32 to vector<8x128xf32>
      %c0_21 = arith.constant 0 : index
      %c0_22 = arith.constant 0 : index
      %62 = vector.load %arg4[%c0_21, %c0_22] : memref<8x128xf32, #tpu.memory_space<vmem>>, vector<8x128xf32>
      tpu.vector_store %arg4[%c0_21, %c0_22], %61 {strides = array<i32>} : memref<8x128xf32, #tpu.memory_space<vmem>>, vector<8x128xf32>,
    } else {
    }
    %c0 = arith.constant 0 : index
    %c0_1 = arith.constant 0 : index
    %3 = vector.load %arg2[%c0, %c0_1] : memref<16x128xf32, #tpu.memory_space<vmem>>, vector<16x128xf32>
    %c0_2 = arith.constant 0 : index
    %c0_3 = arith.constant 0 : index
    %4 = vector.load %arg3[%c0_2, %c0_3] : memref<16x128xf32, #tpu.memory_space<vmem>>, vector<16x128xf32>
    %c1_i32 = arith.constant 1 : i32
    %5 = arith.muli %arg0, %c1_i32 : i32
    %6 = arith.addi %5, %arg1 : i32
    %7 = tpu.iota {dimensions = array<i32: 0>} : vector<16x128xi32>
    %8 = tpu.iota {dimensions = array<i32: 1>} : vector<16x128xi32>
    %c16_i32 = arith.constant 16 : i32
    %9 = arith.muli %6, %c16_i32 : i32
    %10 = vector.broadcast %9 : i32 to vector<16x128xi32>
    %11 = arith.addi %10, %7 : vector<16x128xi32>
    %c128_i32 = arith.constant 128 : i32
    %12 = vector.broadcast %c128_i32 : i32 to vector<16x128xi32>
    %13 = arith.muli %11, %12 : vector<16x128xi32>
    %14 = arith.addi %13, %8 : vector<16x128xi32>
    %c2048_i32 = arith.constant 2048 : i32
    %15 = vector.broadcast %c2048_i32 : i32 to vector<16x128xi32>
    %16 = arith.cmpi slt, %14, %15 : vector<16x128xi32>
    %17 = math.absf %3 : vector<16x128xf32>
    %cst = arith.constant 0.000000e+00 : f32
    %18 = vector.broadcast %cst : f32 to vector<16x128xf32>
    %19 = arith.subf %18, %17 : vector<16x128xf32>
    %20 = math.exp %19 : vector<16x128xf32>
    %cst_4 = arith.constant 0.000000e+00 : f32
    %21 = vector.broadcast %cst_4 : f32 to vector<16x128xf32>
    %22 = arith.maximumf %3, %21 : vector<16x128xf32>
    %23 = arith.mulf %3, %4 : vector<16x128xf32>
    %24 = arith.subf %22, %23 : vector<16x128xf32>
    %25 = math.log1p %20 : vector<16x128xf32>
    %26 = arith.addf %24, %25 : vector<16x128xf32>
    %cst_5 = arith.constant 1.000000e+00 : f32
    %27 = vector.broadcast %cst_5 : f32 to vector<16x128xf32>
    %28 = arith.addf %27, %20 : vector<16x128xf32>
    %29 = tpu.reciprocal %28 : vector<16x128xf32> -> vector<16x128xf32>
    %cst_6 = arith.constant 0.000000e+00 : f32
    %30 = vector.broadcast %cst_6 : f32 to vector<16x128xf32>
    %31 = arith.cmpf oge, %3, %30 : vector<16x128xf32>
    %32 = arith.mulf %20, %29 : vector<16x128xf32>
    %33 = arith.select %31, %29, %32 : vector<16x128xi1>, vector<16x128xf32>
    %cst_7 = arith.constant 1.000000e+00 : f32
    %34 = vector.broadcast %cst_7 : f32 to vector<16x128xf32>
    %35 = arith.subf %34, %33 : vector<16x128xf32>
    %cst_8 = arith.constant 2.000000e+00 : f32
    %36 = vector.broadcast %cst_8 : f32 to vector<16x128xf32>
    %37 = arith.mulf %36, %33 : vector<16x128xf32>
    %cst_9 = arith.constant 1.000000e+00 : f32
    %38 = vector.broadcast %cst_9 : f32 to vector<16x128xf32>
    %39 = arith.subf %37, %38 : vector<16x128xf32>
    %40 = arith.mulf %4, %39 : vector<16x128xf32>
    %41 = arith.addf %35, %40 : vector<16x128xf32>
    %cst_10 = arith.constant -5.000000e-01 : f32
    %42 = vector.broadcast %cst_10 : f32 to vector<16x128xf32>
    %43 = arith.mulf %4, %42 : vector<16x128xf32>
    %cst_11 = arith.constant 7.500000e-01 : f32
    %44 = vector.broadcast %cst_11 : f32 to vector<16x128xf32>
    %45 = arith.addf %44, %43 : vector<16x128xf32>
    %cst_12 = arith.constant 1.000000e+00 : f32
    %46 = vector.broadcast %cst_12 : f32 to vector<16x128xf32>
    %47 = arith.subf %46, %41 : vector<16x128xf32>
    %cst_13 = arith.constant 0.000000e+00 : f32
    %48 = vector.broadcast %cst_13 : f32 to vector<16x128xf32>
    %49 = arith.maximumf %47, %48 : vector<16x128xf32>
    %50 = math.sqrt %49 : vector<16x128xf32>
    %51 = arith.mulf %49, %50 : vector<16x128xf32>
    %52 = arith.mulf %26, %45 : vector<16x128xf32>
    %53 = arith.mulf %52, %51 : vector<16x128xf32>
    %cst_14 = arith.constant 0.000000e+00 : f32
    %54 = vector.broadcast %cst_14 : f32 to vector<16x128xf32>
    %55 = arith.select %16, %53, %54 : vector<16x128xi1>, vector<16x128xf32>
    %c0_15 = arith.constant 0 : index
    %c0_16 = arith.constant 0 : index
    %56 = vector.load %arg4[%c0_15, %c0_16] : memref<8x128xf32, #tpu.memory_space<vmem>>, vector<8x128xf32>
    %57 = vector.shape_cast %55 : vector<16x128xf32> to vector<2x8x128xf32>
    %cst_17 = arith.constant dense<0.000000e+00> : vector<8x128xf32>
    %58 = vector.multi_reduction <add>, %57, %cst_17 [0] : vector<2x8x128xf32> to vector<8x128xf32>
    %59 = arith.addf %56, %58 : vector<8x128xf32>
    %c0_18 = arith.constant 0 : index
    %c0_19 = arith.constant 0 : index
    %60 = vector.load %arg4[%c0_18, %c0_19] : memref<8x128xf32, #tpu.memory_space<vmem>>, vector<8x128xf32>
    tpu.vector_store %arg4[%c0_18, %c0_19], %59 {strides = array<i32>} : memref<8x128xf32, #tpu.memory_space<vmem>>, vector<8x128xf32>,
    return
  }
  func.func @transform_0(%arg0: i32, %arg1: i32) -> (i32, i32) {
    %c1_i32 = arith.constant 1 : i32
    %0 = arith.muli %arg0, %c1_i32 : i32
    %1 = arith.addi %0, %arg1 : i32
    %c0_i32 = arith.constant 0 : i32
    %c0_i32_0 = arith.constant 0 : i32
    return %1, %c0_i32 : i32, i32
  }
  func.func @transform_1(%arg0: i32, %arg1: i32) -> (i32, i32) {
    %c1_i32 = arith.constant 1 : i32
    %0 = arith.muli %arg0, %c1_i32 : i32
    %1 = arith.addi %0, %arg1 : i32
    %c0_i32 = arith.constant 0 : i32
    %c0_i32_0 = arith.constant 0 : i32
    return %1, %c0_i32 : i32, i32
  }
  func.func @transform_2(%arg0: i32, %arg1: i32) -> (i32, i32) {
    %c0_i32 = arith.constant 0 : i32
    %c0_i32_0 = arith.constant 0 : i32
    return %arg0, %c0_i32 : i32, i32
  }
}

</mosaic_0001>

<llo_original>
// kernel: tpu_custom_call.1
$region0: #{tpu_custom_call.1}
  #allocation0 [shape = 'u32[]', space=smem, size = 0x4, offset = 0x4, fixed_abs, tag = 'smem constant byte address 0x4 - core index']
  #allocation1 [shape = 'u32[72,128]{1,0:T(1,128)}', space=vmem, size = 0x9000, scoped, tag = 'internal scratch']
  %s0 = inlined_call_operand.hbm [shape: f32[32,128], index: 0, kind: input, shape index: {}]
  %s1 = inlined_call_operand.hbm [shape: f32[32,128], index: 1, kind: input, shape index: {}]
  %s2 = inlined_call_operand.hbm [shape: f32[16,128], index: 2, kind: output, shape index: {}]
  %s3 = sld [smem:[#allocation0]]
  $region53: #{tpu_custom_call.1} parent=0
    _
  %s5 = ssub.s32 1, %s3
  %s6 = scalar_select 0, %s5, %s3
  $region1: #{tpu_custom_call.1} parent=0
    #allocation2 [shape = 'u8[16384]{0}', space=vmem, size = 0x4000, scoped, tag = 'input window, operand 0']
    #allocation3 [shape = 's32[2]{0}', space=sflag, size = 0x8, scoped, tag = 'scoped memory for tpu_custom_call.1']
    #allocation4 [shape = 's32[2]{0}', space=sflag, size = 0x8, scoped, tag = 'scoped memory for tpu_custom_call.1']
    #allocation5 [shape = 'u8[16384]{0}', space=vmem, size = 0x4000, scoped, tag = 'input window, operand 1']
    #allocation6 [shape = 's32[2]{0}', space=sflag, size = 0x8, scoped, tag = 'scoped memory for tpu_custom_call.1']
    #allocation7 [shape = 'u8[8192]{0}', space=vmem, size = 0x2000, scoped, tag = 'output window, operand 0']
    %7 = vsyncpa [#allocation3], 0
    %s8 = scalar_lea.sflag [#allocation3], 1
    %9 = vsyncpa %s8, 0
    %10 = vsyncpa [#allocation6], 0
    %s11 = scalar_lea.sflag [#allocation6], 1
    %12 = vsyncpa %s11, 0
    %13 = vsyncpa [#allocation4], 0
    %s14 = scalar_lea.sflag [#allocation4], 1
    %15 = vsyncpa %s14, 0
    loop: start=0, step=1, limit=4
    $region2: #{tpu_custom_call.1} parent=1 // loop_pre_header
      _
    $region3: #{tpu_custom_call.1} parent=1 // loop_header
      %s17 = sphi 0, %s21
      %p18 = scmp.ge.s32.totalorder %s17, 4
      %s24 = sphi 0, %s36
      %s25 = sphi 0, %s32
      %s26 = sphi 0, %s24
      %s27 = sphi 0, %s25
      %s28 = sphi 0, %s26
      %s29 = sphi 0, %s27
      %s41 = sphi 0, %s43
      %s44 = sphi 0, %s41
      %s45 = sphi 0, %s44
      %s61 = sphi 0, %s45
      %s69 = sphi 0, %s71
      %s72 = sphi 0, %s69
      %s73 = sphi 0, %s72
      %s89 = sphi 0, %s73
      %s95 = sphi 0, %s97
      %s98 = sphi 0, %s95
      %s99 = sphi 0, %s98
      %s115 = sphi 0, %s99
    $region4: #{tpu_custom_call.1} parent=1 // loop_header_branch
      %20 = sbr.rel (%p18) target = $region8
    $region5: #{tpu_custom_call.1} parent=1 // loop_body
      %s22 = ssub.s32 %s17, 1
      %s23 = ssub.s32 %s17, 2
      %s30 = sadd.s32 1, %s25
      %p31 = scmp.ge.s32.totalorder %s30, 1
      %s32 = scalar_select %p31, 0, %s30
      %s33 = sadd.s32 1, %s24
      %s34 = scalar_select %p31, %s33, %s24
      %p35 = scmp.ge.s32.totalorder %s34, 2
      %s36 = scalar_select %p35, 0, %s34
      %s37 = sadd.s32 %s24, %s25
      %s38 = sadd.s32 %s36, %s32
      %s39 = ssub.s32 %s37, %s38
      %p40 = scmp.eq.s32.totalorder %s39, 0
      %s42 = sadd.s32 %s41, 1
      %s43 = scalar_select %p40, %s41, %s42
      %p46 = pneg %p40
      %p47 = scmp.eq.s32.totalorder %s17, 1
      %p48 = por %p46, %p47
      %p49 = scmp.ne.s32.totalorder %s41, %s44
      %p50 = scmp.eq.s32.totalorder %s17, 0
      %p51 = por %p49, %p50
      %p52 = scmp.ne.s32.totalorder %s41, %s44
      %p53 = scmp.eq.s32.totalorder %s22, 1
      %p54 = por %p52, %p53
      %p55 = scmp.ne.s32.totalorder %s44, %s45
      %p56 = scmp.eq.s32.totalorder %s22, 0
      %p57 = por %p55, %p56
      %p58 = scmp.ne.s32.totalorder %s44, %s45
      %p59 = scmp.eq.s32.totalorder %s23, 1
      %p60 = por %p58, %p59
      %p62 = scmp.ne.s32.totalorder %s45, %s61
      %p63 = scmp.eq.s32.totalorder %s23, 0
      %p64 = por %p62, %p63
      %s65 = sadd.s32 %s24, %s25
      %s66 = sadd.s32 %s36, %s32
      %s67 = ssub.s32 %s65, %s66
      %p68 = scmp.eq.s32.totalorder %s67, 0
      %s70 = sadd.s32 %s69, 1
      %s71 = scalar_select %p68, %s69, %s70
      %p74 = pneg %p68
      %p75 = scmp.eq.s32.totalorder %s17, 1
      %p76 = por %p74, %p75
      %p77 = scmp.ne.s32.totalorder %s69, %s72
      %p78 = scmp.eq.s32.totalorder %s17, 0
      %p79 = por %p77, %p78
      %p80 = scmp.ne.s32.totalorder %s69, %s72
      %p81 = scmp.eq.s32.totalorder %s22, 1
      %p82 = por %p80, %p81
      %p83 = scmp.ne.s32.totalorder %s72, %s73
      %p84 = scmp.eq.s32.totalorder %s22, 0
      %p85 = por %p83, %p84
      %p86 = scmp.ne.s32.totalorder %s72, %s73
      %p87 = scmp.eq.s32.totalorder %s23, 1
      %p88 = por %p86, %p87
      %p90 = scmp.ne.s32.totalorder %s73, %s89
      %p91 = scmp.eq.s32.totalorder %s23, 0
      %p92 = por %p90, %p91
      %s93 = ssub.s32 %s24, %s36
      %p94 = scmp.eq.s32.totalorder %s93, 0
      %s96 = sadd.s32 %s95, 1
      %s97 = scalar_select %p94, %s95, %s96
      %p100 = pneg %p94
      %p101 = scmp.eq.s32.totalorder %s17, 1
      %p102 = por %p100, %p101
      %p103 = scmp.ne.s32.totalorder %s95, %s98
      %p104 = scmp.eq.s32.totalorder %s17, 0
      %p105 = por %p103, %p104
      %p106 = scmp.ne.s32.totalorder %s95, %s98
      %p107 = scmp.eq.s32.totalorder %s22, 1
      %p108 = por %p106, %p107
      %p109 = scmp.ne.s32.totalorder %s98, %s99
      %p110 = scmp.eq.s32.totalorder %s22, 0
      %p111 = por %p109, %p110
      %p112 = scmp.ne.s32.totalorder %s98, %s99
      %p113 = scmp.eq.s32.totalorder %s23, 1
      %p114 = por %p112, %p113
      %p116 = scmp.ne.s32.totalorder %s99, %s115
      %p117 = scmp.eq.s32.totalorder %s23, 0
      %p118 = por %p116, %p117
      %p119 = scmp.le.s32.totalorder 1, %s17
      %p120 = scmp.lt.s32.totalorder %s17, 3
      %p121 = pnand %p119, %p120
      %p122 = pneg %p121
      // Predicated region
      $region9: #{tpu_custom_call.1} parent=5 // pred_check
        _
      $region10: #{tpu_custom_call.1} parent=5 // pred_check_branch
        %124 = sbr.rel (%p121) target = $region12
      $region11: #{tpu_custom_call.1} parent=5 // pred_region
        %s125 = ssub.s32 %s17, 1
      $region12: #{tpu_custom_call.1} parent=5 // pred_fallthru
        _
      %p126 = scmp.lt.s32.totalorder %s17, 2
      // Predicated region
      $region13: #{tpu_custom_call.1} parent=5 // pred_check
        %p127 = pneg %p126
      $region14: #{tpu_custom_call.1} parent=5 // pred_check_branch
        %129 = sbr.rel (%p127) target = $region16
      $region15: #{tpu_custom_call.1} parent=5 // pred_region
        // Predicated region
        $region17: #{tpu_custom_call.1} parent=15 // pred_check
          %p130 = pneg %p51
        $region18: #{tpu_custom_call.1} parent=15 // pred_check_branch
          %132 = sbr.rel (%p130) target = $region20
        $region19: #{tpu_custom_call.1} parent=15 // pred_region
          %s133 = sand.u32 %s41, 1
          %s134 = scalar_lea.sflag [#allocation3], %s133
          %s135 = sand.u32 %s41, 1
          %s136 = smul.addr %s135, 16
          %s137 = scalar_lea.vmem [#allocation2], %s136
          %s138 = sadd.s32 %s24, %s25
          %s139 = smul.u32 2, %s138
          %141 = vsyncadd %s134, 0
          %s142 = smul.addr %s139, 8
          %s143 = scalar_lea.hbm %s0, %s142
          %s144 = sshll.u32 %s143, 4
          %s145 = int_to_ptr.hbm [resolvable:$true] %s144
          %s146 = sshll.u32 %s137, 4
          %s147 = int_to_ptr.vmem [resolvable:$true] %s146
          %152 = dma.hbm_to_vmem [thread:$0]  %s145, 256, %s147, %s134, 128, 128, 8
        $region20: #{tpu_custom_call.1} parent=15 // pred_fallthru
          _
        // Predicated region
        $region21: #{tpu_custom_call.1} parent=15 // pred_check
          %p153 = pneg %p79
        $region22: #{tpu_custom_call.1} parent=15 // pred_check_branch
          %155 = sbr.rel (%p153) target = $region24
        $region23: #{tpu_custom_call.1} parent=15 // pred_region
          %s156 = sand.u32 %s69, 1
          %s157 = scalar_lea.sflag [#allocation6], %s156
          %s158 = sand.u32 %s69, 1
          %s159 = smul.addr %s158, 16
          %s160 = scalar_lea.vmem [#allocation5], %s159
          %s161 = sadd.s32 %s24, %s25
          %s162 = smul.u32 2, %s161
          %164 = vsyncadd %s157, 0
          %s165 = smul.addr %s162, 8
          %s166 = scalar_lea.hbm %s1, %s165
          %s167 = sshll.u32 %s166, 4
          %s168 = int_to_ptr.hbm [resolvable:$true] %s167
          %s169 = sshll.u32 %s160, 4
          %s170 = int_to_ptr.vmem [resolvable:$true] %s169
          %175 = dma.hbm_to_vmem [thread:$0]  %s168, 256, %s170, %s157, 128, 128, 8
        $region24: #{tpu_custom_call.1} parent=15 // pred_fallthru
          _
      $region16: #{tpu_custom_call.1} parent=5 // pred_fallthru
        _
      %p176 = scmp.le.s32.totalorder 1, %s17
      %p177 = scmp.lt.s32.totalorder %s17, 3
      %p178 = pnand %p176, %p177
      %p179 = pneg %p178
      // Predicated region
      $region25: #{tpu_custom_call.1} parent=5 // pred_check
        _
      $region26: #{tpu_custom_call.1} parent=5 // pred_check_branch
        %181 = sbr.rel (%p178) target = $region28
      $region27: #{tpu_custom_call.1} parent=5 // pred_region
        %s182 = ssub.s32 %s17, 1
        %s183 = sand.u32 %s44, 1
        %s184 = scalar_lea.sflag [#allocation3], %s183
        %s185 = sand.u32 %s44, 1
        %s186 = smul.addr %s185, 16
        %s187 = scalar_lea.vmem [#allocation2], %s186
        // Predicated region
        $region29: #{tpu_custom_call.1} parent=27 // pred_check
          %p188 = pneg %p57
        $region30: #{tpu_custom_call.1} parent=27 // pred_check_branch
          %190 = sbr.rel (%p188) target = $region32
        $region31: #{tpu_custom_call.1} parent=27 // pred_region
          %192 = dma.done %s184, 256
        $region32: #{tpu_custom_call.1} parent=27 // pred_fallthru
          _
        %s193 = sand.u32 %s72, 1
        %s194 = scalar_lea.sflag [#allocation6], %s193
        %s195 = sand.u32 %s72, 1
        %s196 = smul.addr %s195, 16
        %s197 = scalar_lea.vmem [#allocation5], %s196
        // Predicated region
        $region33: #{tpu_custom_call.1} parent=27 // pred_check
          %p198 = pneg %p85
        $region34: #{tpu_custom_call.1} parent=27 // pred_check_branch
          %200 = sbr.rel (%p198) target = $region36
        $region35: #{tpu_custom_call.1} parent=27 // pred_region
          %202 = dma.done %s194, 256
        $region36: #{tpu_custom_call.1} parent=27 // pred_fallthru
          _
        %s203 = sand.u32 %s44, 1
        %s204 = scalar_lea.sflag [#allocation3], %s203
        %s205 = sand.u32 %s44, 1
        %s206 = smul.addr %s205, 16
        %s207 = scalar_lea.vmem [#allocation2], %s206
        %p208 = pneg %p57
        %p209 = pneg %p54
        %s210 = sand.u32 %s72, 1
        %s211 = scalar_lea.sflag [#allocation6], %s210
        %s212 = sand.u32 %s72, 1
        %s213 = smul.addr %s212, 16
        %s214 = scalar_lea.vmem [#allocation5], %s213
        %p215 = pneg %p85
        %p216 = pneg %p82
        %p217 = pneg %p111
        %p218 = pneg %p108
        %s219 = sand.u32 %s98, 1
        %s220 = scalar_lea.sflag [#allocation4], %s219
        %s221 = sand.u32 %s98, 1
        %s222 = smul.addr %s221, 8
        %s223 = scalar_lea.vmem [#allocation7], %s222
        %s224 = sadd.s32 %s26, %s27
        %s225 = smul.u32 2, %s224
        %s226 = sadd.s32 %s26, %s27
        %s227 = smul.u32 2, %s226
        %p228 = scmp.eq.s32.totalorder %s27, 0
        // Predicated region
        $region37: #{tpu_custom_call.1} parent=27 // pred_check
          %p229 = pneg %p228
        $region38: #{tpu_custom_call.1} parent=27 // pred_check_branch
          %231 = sbr.rel (%p229) target = $region40
        $region39: #{tpu_custom_call.1} parent=27 // pred_region
          %232 = vst [vmem:[%s223] sm:$0xff] 0.0
        $region40: #{tpu_custom_call.1} parent=27 // pred_fallthru
          _
        %v233 = vld [vmem:[%s187] sm:$0xff]
        %v234 = vld [vmem:[%s187 + $0x8] sm:$0xff]
        %v235 = vld [vmem:[%s197] sm:$0xff]
        %v236 = vld [vmem:[%s197 + $0x8] sm:$0xff]
        %s237 = sadd.s32 %s26, %s27
        %v238 = vlaneseq
        %v239 = vshrl.u32 %v238, 7
        %v240 = vadd.s32 %v239, 8
        %v241 = vlaneseq
        %v242 = vand.u32 %v241, 127
        %s243 = smul.u32 %s237, 16
        %v244 = vstv %s243
        %v245 = vadd.s32 %v244, %v239
        %v246 = vadd.s32 %v244, %v240
        %v247 = vmul.u32 %v245, 128
        %v248 = vmul.u32 %v246, 128
        %v249 = vadd.s32 %v247, %v242
        %v250 = vadd.s32 %v248, %v242
        %vm251 = vcmp.lt.s32.totalorder %v249, 2048
        %vm252 = vcmp.lt.s32.totalorder %v250, 2048
        %v253 = vand.u32 2147483647, %v233
        %v254 = vand.u32 2147483647, %v234
        %v255 = vsub.f32 0.0, %v253
        %v256 = vsub.f32 0.0, %v254
        %v257 = vmul.f32 %v255, 1.442695
        %v258 = vpow.pop %v257
        %v259 = vmul.f32 %v256, 1.442695
        %v260 = vpow.pop %v259
        %v261 = vmax.f32 %v233, 0.0
        %v262 = vmax.f32 %v234, 0.0
        %v263 = vmul.f32 %v233, %v235
        %v264 = vmul.f32 %v234, %v236
        %v265 = vsub.f32 %v261, %v263
        %v266 = vsub.f32 %v262, %v264
        %v267 = vadd.f32 %v258, 1.0
        %v268 = vlog2.pop %v267
        %v269 = vmul.f32 %v268, 0.6931472
        %v270 = vmul.f32 -0.5, %v258
        %v271 = vadd.f32 %v270, 1.0
        %v272 = vmul.f32 %v271, %v258
        %v273 = vand.u32 2147483647, %v258
        %vm274 = vcmp.lt.f32.partialorder %v273, 0.0004427343
        %v275 = vsel %vm274, %v272, %v269
        %v276 = vadd.f32 %v260, 1.0
        %v277 = vlog2.pop %v276
        %v278 = vmul.f32 %v277, 0.6931472
        %v279 = vmul.f32 -0.5, %v260
        %v280 = vadd.f32 %v279, 1.0
        %v281 = vmul.f32 %v280, %v260
        %v282 = vand.u32 2147483647, %v260
        %vm283 = vcmp.lt.f32.partialorder %v282, 0.0004427343
        %v284 = vsel %vm283, %v281, %v278
        %v285 = vadd.f32 %v265, %v275
        %v286 = vadd.f32 %v266, %v284
        %v287 = vadd.f32 %v258, 1.0
        %v288 = vadd.f32 %v260, 1.0
        %v289 = vrcp.pop %v287
        %v290 = vmul.f32 %v287, %v289
        %v291 = vsub.f32 1.0, %v290
        %v292 = vmul.f32 %v289, %v291
        %v293 = vadd.f32 %v289, %v292
        %vm294 = vweird.f32 %v287
        %vm295 = vweird.f32 %v289
        %vm296 = vmor %vm294, %vm295
        %v297 = vsel %vm296, %v289, %v293
        %v298 = vand.u32 2147483647, %v287
        %vm299 = vcmp.eq.f32.partialorder %v298, 8.507059e+37
        %v300 = vand.u32 %v287, 2147483648
        %v301 = vor.u32 1.1754944e-38, %v300
        %v302 = vsel %vm299, %v301, %v297
        %v303 = vrcp.pop %v288
        %v304 = vmul.f32 %v288, %v303
        %v305 = vsub.f32 1.0, %v304
        %v306 = vmul.f32 %v303, %v305
        %v307 = vadd.f32 %v303, %v306
        %vm308 = vweird.f32 %v288
        %vm309 = vweird.f32 %v303
        %vm310 = vmor %vm308, %vm309
        %v311 = vsel %vm310, %v303, %v307
        %v312 = vand.u32 2147483647, %v288
        %vm313 = vcmp.eq.f32.partialorder %v312, 8.507059e+37
        %v314 = vand.u32 %v288, 2147483648
        %v315 = vor.u32 1.1754944e-38, %v314
        %v316 = vsel %vm313, %v315, %v311
        %vm317 = vcmp.ge.f32.partialorder %v233, 0.0
        %vm318 = vcmp.ge.f32.partialorder %v234, 0.0
        %v319 = vmul.f32 %v258, %v302
        %v320 = vmul.f32 %v260, %v316
        %v321 = vsel %vm317, %v302, %v319
        %v322 = vsel %vm318, %v316, %v320
        %v323 = vsub.f32 1.0, %v321
        %v324 = vsub.f32 1.0, %v322
        %v325 = vmul.f32 %v321, 2.0
        %v326 = vmul.f32 %v322, 2.0
        %v327 = vsub.f32 %v325, 1.0
        %v328 = vsub.f32 %v326, 1.0
        %v329 = vmul.f32 %v235, %v327
        %v330 = vmul.f32 %v236, %v328
        %v331 = vadd.f32 %v323, %v329
        %v332 = vadd.f32 %v324, %v330
        %v333 = vmul.f32 %v235, -0.5
        %v334 = vmul.f32 %v236, -0.5
        %v335 = vadd.f32 %v333, 0.75
        %v336 = vadd.f32 %v334, 0.75
        %v337 = vsub.f32 1.0, %v331
        %v338 = vsub.f32 1.0, %v332
        %v339 = vmax.f32 %v337, 0.0
        %v340 = vmax.f32 %v338, 0.0
        %v341 = vrsqrt.pop %v339
        %v342 = vmul.f32 %v341, %v339
        %v343 = vmul.f32 %v342, %v341
        %v344 = vmul.f32 0.5, %v343
        %v345 = vsub.f32 1.5, %v344
        %v346 = vmul.f32 %v341, %v345
        %v347 = vmul.f32 %v339, %v346
        %vm348 = vcmp.eq.f32.partialorder %v339, inf
        %v349 = vsel %vm348, %v339, %v347
        %vm350 = vcmp.eq.f32.partialorder %v339, 0.0
        %v351 = vand.u32 %v339, 2147483648
        %v352 = vsel %vm350, %v351, %v349
        %v353 = vrsqrt.pop %v340
        %v354 = vmul.f32 %v353, %v340
        %v355 = vmul.f32 %v354, %v353
        %v356 = vmul.f32 0.5, %v355
        %v357 = vsub.f32 1.5, %v356
        %v358 = vmul.f32 %v353, %v357
        %v359 = vmul.f32 %v340, %v358
        %vm360 = vcmp.eq.f32.partialorder %v340, inf
        %v361 = vsel %vm360, %v340, %v359
        %vm362 = vcmp.eq.f32.partialorder %v340, 0.0
        %v363 = vand.u32 %v340, 2147483648
        %v364 = vsel %vm362, %v363, %v361
        %v365 = vmul.f32 %v339, %v352
        %v366 = vmul.f32 %v340, %v364
        %v367 = vmul.f32 %v285, %v335
        %v368 = vmul.f32 %v286, %v336
        %v369 = vmul.f32 %v367, %v365
        %v370 = vmul.f32 %v368, %v366
        %v371 = vsel %vm251, %v369, 0.0
        %v372 = vsel %vm252, %v370, 0.0
        %v373 = vld [vmem:[%s223] sm:$0xff]
        %v374 = vadd.f32 %v371, %v372
        %v375 = vadd.f32 %v373, %v374
        %376 = vst [vmem:[%s223] sm:$0xff] %v375
        %s377 = sand.u32 %s98, 1
        %s378 = scalar_lea.sflag [#allocation4], %s377
        %s379 = sand.u32 %s98, 1
        %s380 = smul.addr %s379, 8
        %s381 = scalar_lea.vmem [#allocation7], %s380
        // Predicated region
        $region41: #{tpu_custom_call.1} parent=27 // pred_check
          %p382 = pneg %p108
        $region42: #{tpu_custom_call.1} parent=27 // pred_check_branch
          %384 = sbr.rel (%p382) target = $region44
        $region43: #{tpu_custom_call.1} parent=27 // pred_region
          %386 = vsyncadd %s378, 0
          %s387 = smul.addr %s26, 8
          %s388 = scalar_lea.hbm %s2, %s387
          %s390 = sshll.u32 %s381, 4
          %s391 = int_to_ptr.vmem [resolvable:$true] %s390
          %s392 = sshll.u32 %s388, 4
          %s393 = int_to_ptr.hbm [resolvable:$true] %s392
          %395 = dma.vmem_to_hbm [thread:$0]  %s391, 128, %s393, %s378
        $region44: #{tpu_custom_call.1} parent=27 // pred_fallthru
          _
      $region28: #{tpu_custom_call.1} parent=5 // pred_fallthru
        _
      %p396 = scmp.le.s32.totalorder 2, %s17
      // Predicated region
      $region45: #{tpu_custom_call.1} parent=5 // pred_check
        %p397 = pneg %p396
      $region46: #{tpu_custom_call.1} parent=5 // pred_check_branch
        %399 = sbr.rel (%p397) target = $region48
      $region47: #{tpu_custom_call.1} parent=5 // pred_region
        %s400 = ssub.s32 %s17, 2
        // Predicated region
        $region49: #{tpu_custom_call.1} parent=47 // pred_check
          %p401 = pneg %p114
        $region50: #{tpu_custom_call.1} parent=47 // pred_check_branch
          %403 = sbr.rel (%p401) target = $region52
        $region51: #{tpu_custom_call.1} parent=47 // pred_region
          %s404 = sand.u32 %s99, 1
          %s405 = scalar_lea.sflag [#allocation4], %s404
          %s406 = sand.u32 %s99, 1
          %s407 = smul.addr %s406, 8
          %s408 = scalar_lea.vmem [#allocation7], %s407
          %410 = dma.done %s405, 128
        $region52: #{tpu_custom_call.1} parent=47 // pred_fallthru
          _
      $region48: #{tpu_custom_call.1} parent=5 // pred_fallthru
        _
    $region6: #{tpu_custom_call.1} parent=1 // loop_footer
      %s21 = sadd.s32 1, %s17
    $region7: #{tpu_custom_call.1} parent=1 // loop_footer_branch
      %16 = sbr.rel target = $region3
    $region8: #{tpu_custom_call.1} parent=1 // loop_exit
      _
    %411 = vsyncpa [#allocation3], 1
    %s412 = scalar_lea.sflag [#allocation3], 1
    %413 = vsyncpa %s412, 1
    %414 = vsyncpa [#allocation6], 1
    %s415 = scalar_lea.sflag [#allocation6], 1
    %416 = vsyncpa %s415, 1
    %417 = vsyncpa [#allocation4], 1
    %s418 = scalar_lea.sflag [#allocation4], 1
    %419 = vsyncpa %s418, 1

</llo_original>
